<compile_context>
chip_gen: v7x
topology: tpu7x:2x2x1
jax: 0.10.0
libtpu: 0.0.40
codegen_flags: <defaults>
</compile_context>

<pallas_src>
import math

import jax
import jax.numpy as jnp
from jax import lax
from jax.experimental import pallas as pl
from jax.experimental.pallas import tpu as pltpu


# ----------------------------- small helpers --------------------------------

def _round_up(x, m):
    return (x + m - 1) // m * m


def _pick_tile(dim, target, align):
    """Largest multiple of `align` <= target that divides dim, else full dim."""
    if dim <= target:
        return dim
    t = (target // align) * align
    while t >= align:
        if dim % t == 0:
            return t
        t -= align
    # TODO(synk): pad + mask the kv remainder instead of a full-dim block for
    # awkward sequence lengths.
    return dim


# ----------------------------- linear kernels -------------------------------

def linear_kernel_single(x_ref, w_ref, b_ref, o_ref):
    """x @ W + b with the whole K in one shot (no reduction grid axis)."""
    o_ref[...] = (jnp.dot(x_ref[...], w_ref[...],
                          preferred_element_type=jnp.float32)
                  + b_ref[...].astype(jnp.float32)).astype(o_ref.dtype)


def linear_kernel_acc(x_ref, w_ref, b_ref, o_ref, acc_ref):
    """Tiled x @ W + b with K as a reduction grid axis and an f32 accumulator."""
    @pl.when(pl.program_id(2) == 0)
    def _init():
        acc_ref[...] = jnp.zeros_like(acc_ref)

    acc_ref[...] += jnp.dot(x_ref[...], w_ref[...],
                            preferred_element_type=jnp.float32)

    @pl.when(pl.program_id(2) == pl.num_programs(2) - 1)
    def _finalize():
        o_ref[...] = (acc_ref[...] + b_ref[...].astype(jnp.float32)
                      ).astype(o_ref.dtype)


def pallas_linear(x2d, w, b, *, out_dtype,
                  tm_target=512, tn_target=512, tk_target=512):
    """x2d: (M, K), w: (K, N) [compute dtype], b: (N,) f32 -> (M, N) out_dtype."""
    M, K = x2d.shape
    Kw, N = w.shape
    assert Kw == K
    dtype = w.dtype
    x2d = x2d.astype(dtype)
    itemsize = jnp.dtype(dtype).itemsize
    sub_align = 8 if itemsize >= 4 else 16

    # Tile sizes; dims are padded up to the tile so the grid always divides
    # evenly (no un-pipelined full-dimension fallback for awkward B*S / d_model).
    tm = min(tm_target, _round_up(M, sub_align))
    tn = N if N <= tn_target else tn_target          # tn_target is a 128 multiple
    single_k_limit = 2048 if itemsize >= 4 else 4096
    single_k = K <= single_k_limit
    tk = K if single_k else tk_target

    Mp, Np, Kp = _round_up(M, tm), _round_up(N, tn), _round_up(K, tk)
    if (Mp, Kp) != (M, K):
        x2d = jnp.pad(x2d, ((0, Mp - M), (0, Kp - K)))
    if (Kp, Np) != (K, N):
        w = jnp.pad(w, ((0, Kp - K), (0, Np - N)))
    b2d = b.reshape(1, N).astype(jnp.float32)
    if Np != N:
        b2d = jnp.pad(b2d, ((0, 0), (0, Np - N)))

    # Explicit VMEM budget: double-buffered input/output tiles (+ accumulator).
    out_itemsize = jnp.dtype(out_dtype).itemsize
    bufs = (2 * (tm * tk + tk * tn + tn) * itemsize
            + 2 * tm * tn * out_itemsize
            + (0 if single_k else tm * tn * 4))
    vmem_limit = int(min(48 << 20, max(16 << 20, 2 * bufs)))

    if single_k:
        out = pl.pallas_call(
            linear_kernel_single,
            out_shape=jax.ShapeDtypeStruct((Mp, Np), out_dtype),
            grid=(Mp // tm, Np // tn),
            in_specs=[pl.BlockSpec((tm, tk), lambda i, j: (i, 0)),
                      pl.BlockSpec((tk, tn), lambda i, j: (0, j)),
                      pl.BlockSpec((1, tn), lambda i, j: (0, j))],
            out_specs=pl.BlockSpec((tm, tn), lambda i, j: (i, j)),
            compiler_params=pltpu.CompilerParams(
                dimension_semantics=("parallel", "parallel"),
                vmem_limit_bytes=vmem_limit),
        )(x2d, w, b2d)
    else:
        out = pl.pallas_call(
            linear_kernel_acc,
            out_shape=jax.ShapeDtypeStruct((Mp, Np), out_dtype),
            grid=(Mp // tm, Np // tn, Kp // tk),
            in_specs=[pl.BlockSpec((tm, tk), lambda i, j, k: (i, k)),
                      pl.BlockSpec((tk, tn), lambda i, j, k: (k, j)),
                      pl.BlockSpec((1, tn), lambda i, j, k: (0, j))],
            out_specs=pl.BlockSpec((tm, tn), lambda i, j, k: (i, j)),
            scratch_shapes=[pltpu.VMEM((tm, tn), jnp.float32)],
            compiler_params=pltpu.CompilerParams(
                dimension_semantics=("parallel", "parallel", "arbitrary"),
                vmem_limit_bytes=vmem_limit),
        )(x2d, w, b2d)

    if (Mp, Np) != (M, N):
        out = out[:M, :N]
    return out


# --------------------------- flash attention kernel --------------------------

def flash_attn_kernel(q_ref, k_ref, v_ref, o_ref, m_sc, l_sc, acc_sc):
    """One (tq, tkv) online-softmax step for one (batch, head, q-tile).

    Refs (leading grid dims squeezed away):
      q_ref : (tq, Dh)   k_ref, v_ref : (tkv, Dh)   o_ref : (tq, Dh)
    VMEM scratch (persists across the kv grid axis):
      m_sc, l_sc : (tq, 1) f32,  acc_sc : (tq, Dh) f32

    Scale (1/sqrt(Dh)) is already folded into the Q projection weights.
    Softmax math stays f32 (v5e has no bf16 VPU/EUP); MXU operands keep the
    input dtype (bf16 on the fast path) with f32 accumulation.
    """
    ki = pl.program_id(3)

    @pl.when(ki == 0)
    def _init():
        m_sc[...] = jnp.full_like(m_sc, -jnp.inf)
        l_sc[...] = jnp.zeros_like(l_sc)
        acc_sc[...] = jnp.zeros_like(acc_sc)

    # Contract last dims directly (no explicit K transpose), f32 scores.
    s = lax.dot_general(q_ref[...], k_ref[...], (((1,), (1,)), ((), ())),
                        preferred_element_type=jnp.float32)        # (tq, tkv)

    m_prev = m_sc[...]
    m_new = jnp.maximum(m_prev, jnp.max(s, axis=-1, keepdims=True))
    alpha = jnp.exp(m_prev - m_new)
    p = jnp.exp(s - m_new)                                         # f32
    l_sc[...] = alpha * l_sc[...] + jnp.sum(p, axis=-1, keepdims=True)
    acc_sc[...] = alpha * acc_sc[...] + jnp.dot(
        p.astype(v_ref.dtype), v_ref[...], preferred_element_type=jnp.float32)
    m_sc[...] = m_new

    @pl.when(ki == pl.num_programs(3) - 1)
    def _finalize():
        # Exact divide, once per q tile (keeps parity with exact softmax).
        o_ref[...] = (acc_sc[...] / l_sc[...]).astype(o_ref.dtype)


def _flash_scratch(tq, head_dim):
    return [pltpu.VMEM((tq, 1), jnp.float32),
            pltpu.VMEM((tq, 1), jnp.float32),
            pltpu.VMEM((tq, head_dim), jnp.float32)]


def _flash_vmem_budget(tq, tkv, head_dim, in_dtype, out_dtype):
    in_sz = jnp.dtype(in_dtype).itemsize
    out_sz = jnp.dtype(out_dtype).itemsize
    bufs = (2 * (tq * head_dim + 2 * tkv * head_dim) * in_sz
            + 2 * tq * head_dim * out_sz
            + (tq * head_dim + 2 * tq) * 4)
    return int(min(48 << 20, max(16 << 20, 2 * bufs)))


def pallas_flash_attention_lane(q_arr, k_arr, v_arr, *, n_heads, head_dim,
                                d_model, q_base, k_base, v_base, out_dtype,
                                tq_target=256, tkv_target=512):
    """Flash attention reading per-head (tile, Dh) blocks directly out of the
    lane-dense projections (requires head_dim % 128 == 0 -> lane-aligned).
    q/k/v may be the same fused (B,S,3D) array (bases 0/H/2H) or three
    separate (B,S,D) arrays (bases 0/0/0).  Output is lane-dense (B,Sq,D)."""
    B, seq_q, _ = q_arr.shape
    seq_kv = k_arr.shape[1]
    tq = _pick_tile(seq_q, tq_target, 16)
    tkv = _pick_tile(seq_kv, tkv_target, 16)
    grid = (B, n_heads, seq_q // tq, seq_kv // tkv)

    q_spec = pl.BlockSpec((None, tq, head_dim),
                          lambda b, h, qi, ki: (b, qi, q_base + h))
    k_spec = pl.BlockSpec((None, tkv, head_dim),
                          lambda b, h, qi, ki: (b, ki, k_base + h))
    v_spec = pl.BlockSpec((None, tkv, head_dim),
                          lambda b, h, qi, ki: (b, ki, v_base + h))
    o_spec = pl.BlockSpec((None, tq, head_dim),
                          lambda b, h, qi, ki: (b, qi, h))

    return pl.pallas_call(
        flash_attn_kernel,
        out_shape=jax.ShapeDtypeStruct((B, seq_q, d_model), out_dtype),
        grid=grid,
        in_specs=[q_spec, k_spec, v_spec],
        out_specs=o_spec,
        scratch_shapes=_flash_scratch(tq, head_dim),
        compiler_params=pltpu.CompilerParams(
            dimension_semantics=("parallel", "parallel", "parallel", "arbitrary"),
            vmem_limit_bytes=_flash_vmem_budget(tq, tkv, head_dim,
                                                q_arr.dtype, out_dtype)),
    )(q_arr, k_arr, v_arr)


def pallas_flash_attention_bhsd(q4, k4, v4, *, out_dtype,
                                tq_target=256, tkv_target=512):
    """Flash attention on head-major (B, H, S, Dh) tensors (any head_dim)."""
    B, H, seq_q, head_dim = q4.shape
    seq_kv = k4.shape[2]
    tq = _pick_tile(seq_q, tq_target, 16)
    tkv = _pick_tile(seq_kv, tkv_target, 16)
    grid = (B, H, seq_q // tq, seq_kv // tkv)

    q_spec = pl.BlockSpec((None, None, tq, head_dim),
                          lambda b, h, qi, ki: (b, h, qi, 0))
    kv_spec = pl.BlockSpec((None, None, tkv, head_dim),
                           lambda b, h, qi, ki: (b, h, ki, 0))
    o_spec = pl.BlockSpec((None, None, tq, head_dim),
                          lambda b, h, qi, ki: (b, h, qi, 0))

    return pl.pallas_call(
        flash_attn_kernel,
        out_shape=jax.ShapeDtypeStruct((B, H, seq_q, head_dim), out_dtype),
        grid=grid,
        in_specs=[q_spec, kv_spec, kv_spec],
        out_specs=o_spec,
        scratch_shapes=_flash_scratch(tq, head_dim),
        compiler_params=pltpu.CompilerParams(
            dimension_semantics=("parallel", "parallel", "parallel", "arbitrary"),
            vmem_limit_bytes=_flash_vmem_budget(tq, tkv, head_dim,
                                                q4.dtype, out_dtype)),
    )(q4, k4, v4)


# ------------------------------ JAX module -----------------------------------

def _split_heads(x, n_heads, head_dim):
    B, S, _ = x.shape
    return x.reshape(B, S, n_heads, head_dim).transpose(0, 2, 1, 3)   # (B,H,S,Dh)


def _merge_heads(x4):
    B, H, S, Dh = x4.shape
    return x4.transpose(0, 2, 1, 3).reshape(B, S, H * Dh)


class MultiHeadAttentionPallas:
    """Mirrors the PyTorch MultiHeadAttention forward semantics (mask=None)."""

    def __init__(self, d_model, n_heads, key, compute_dtype=jnp.bfloat16):
        assert d_model % n_heads == 0, "d_model must be divisible by n_heads"
        self.d_model = d_model
        self.n_heads = n_heads
        self.head_dim = d_model // n_heads
        self.compute_dtype = compute_dtype

        # Deterministic init mimicking nn.Linear: U(-1/sqrt(in), 1/sqrt(in)).
        # Weights stored pre-transposed as (in_features, out_features).
        bound = 1.0 / math.sqrt(d_model)
        keys = jax.random.split(key, 8)

        def init_w(k):
            return jax.random.uniform(k, (d_model, d_model), jnp.float32,
                                      -bound, bound)

        def init_b(k):
            return jax.random.uniform(k, (d_model,), jnp.float32, -bound, bound)

        self.wq, self.bq = init_w(keys[0]), init_b(keys[1])
        self.wk, self.bk = init_w(keys[2]), init_b(keys[3])
        self.wv, self.bv = init_w(keys[4]), init_b(keys[5])
        self.wo, self.bo = init_w(keys[6]), init_b(keys[7])

        # 1/sqrt(head_dim) folded into the Q projection (weights AND bias):
        # zero runtime cost, removes the per-element scale mul from the kernel.
        scale = 1.0 / math.sqrt(self.head_dim)
        wq_s, bq_s = self.wq * scale, self.bq * scale

        cd = compute_dtype
        # Fused QKV projection (self-attention): read x once, write (B*S, 3D).
        self.w_qkv = jnp.concatenate([wq_s, self.wk, self.wv], axis=1).astype(cd)
        self.b_qkv = jnp.concatenate([bq_s, self.bk, self.bv], axis=0)  # f32 bias
        # Separate projections (cross-attention path), MXU-dtype weights.
        self.wq_c, self.bq_c = wq_s.astype(cd), bq_s
        self.wk_c, self.bk_c = self.wk.astype(cd), self.bk
        self.wv_c, self.bv_c = self.wv.astype(cd), self.bv
        self.wo_c, self.bo_c = self.wo.astype(cd), self.bo

    def _attention(self, q_p, k_p, v_p, *, fused):
        """q_p/k_p/v_p: lane-dense projections.  fused=True -> one (B,S,3D) buf."""
        H, Dh, D = self.n_heads, self.head_dim, self.d_model
        cd = self.compute_dtype
        if Dh % 128 == 0:
            # Lane-aligned per-head slices: no HBM head split/merge transposes.
            if fused:
                return pallas_flash_attention_lane(
                    q_p, q_p, q_p, n_heads=H, head_dim=Dh, d_model=D,
                    q_base=0, k_base=H, v_base=2 * H, out_dtype=cd)
            return pallas_flash_attention_lane(
                q_p, k_p, v_p, n_heads=H, head_dim=Dh, d_model=D,
                q_base=0, k_base=0, v_base=0, out_dtype=cd)
        # Small head_dim: per-head lane slices of (S, 3D) would be unaligned
        # (masked loads / relayout per head), so go head-major via XLA instead.
        if fused:
            q_p, k_p, v_p = (q_p[..., :D], q_p[..., D:2 * D], q_p[..., 2 * D:])
        out4 = pallas_flash_attention_bhsd(
            _split_heads(q_p, H, Dh), _split_heads(k_p, H, Dh),
            _split_heads(v_p, H, Dh), out_dtype=cd)
        return _merge_heads(out4)

    def __call__(self, q, k, v):
        B, Sq, D = q.shape
        Skv = k.shape[1]
        cd = self.compute_dtype

        # Trace-time dispatch only; both branches are numerically equivalent.
        self_attn = (q is k) and (q is v)

        if self_attn:
            qkv = pallas_linear(q.reshape(B * Sq, D).astype(cd),
                                self.w_qkv, self.b_qkv,
                                out_dtype=cd).reshape(B, Sq, 3 * D)
            attn = self._attention(qkv, None, None, fused=True)
        else:
            # Three separate projections fed straight to the flash kernel:
            # no wrapper-level concat / extra HBM round trip.
            q_p = pallas_linear(q.reshape(B * Sq, D).astype(cd), self.wq_c,
                                self.bq_c, out_dtype=cd).reshape(B, Sq, D)
            k_p = pallas_linear(k.reshape(B * Skv, D).astype(cd), self.wk_c,
                                self.bk_c, out_dtype=cd).reshape(B, Skv, D)
            v_p = pallas_linear(v.reshape(B * Skv, D).astype(cd), self.wv_c,
                                self.bv_c, out_dtype=cd).reshape(B, Skv, D)
            attn = self._attention(q_p, k_p, v_p, fused=False)

        # Output projection on the lane-dense attention output; final result f32.
        out = pallas_linear(attn.reshape(B * Sq, D).astype(cd),
                            self.wo_c, self.bo_c, out_dtype=jnp.float32)
        return out.reshape(B, Sq, D)


# ------------------------------- reference ----------------------------------

def reference_mha(mha, q, k, v):
    """Pure-JAX f32 reference reproducing the PyTorch forward (mask=None)."""
    B, S, D = q.shape
    H, Dh = mha.n_heads, mha.head_dim

    def lin(x, w, b):
        return x @ w + b

    qp = lin(q, mha.wq, mha.bq).reshape(B, S, H, Dh).transpose(0, 2, 1, 3)
    kp = lin(k, mha.wk, mha.bk).reshape(B, k.shape[1], H, Dh).transpose(0, 2, 1, 3)
    vp = lin(v, mha.wv, mha.bv).reshape(B, v.shape[1], H, Dh).transpose(0, 2, 1, 3)
    scores = jnp.einsum("bhqd,bhkd->bhqk", qp, kp) / math.sqrt(Dh)
    p = jax.nn.softmax(scores, axis=-1)
    o = jnp.einsum("bhqk,bhkd->bhqd", p, vp)
    o = o.transpose(0, 2, 1, 3).reshape(B, S, D)
    return lin(o, mha.wo, mha.bo)


# --------------------------------- main --------------------------------------

if __name__ == "__main__":
    # --- Config A: module-spec small shapes, bf16 MXU operands, self-attention
    #     (fused QKV projection + head-major flash path since Dh=8 < 128).
    B, S, D_MODEL, N_HEADS = 2, 8, 32, 4
    k_param, k_in = jax.random.split(jax.random.PRNGKey(0), 2)
    mha = MultiHeadAttentionPallas(D_MODEL, N_HEADS, k_param,
                                   compute_dtype=jnp.bfloat16)
    x = jax.random.normal(k_in, (B, S, D_MODEL), jnp.float32)
    out = jax.block_until_ready(mha(x, x, x))
    ref = reference_mha(mha, x, x, x)
    assert out.shape == (B, S, D_MODEL)
    # Tolerance dominated by bf16 MXU operands (accumulation is f32).
    assert jnp.allclose(out, ref, atol=5e-2, rtol=5e-2), "bf16 self-attn mismatch"

    # --- Config B: head_dim=128 exercises the lane-aligned (no head-transpose)
    #     flash path; distinct k/v exercise the separate-projection path; f32
    #     compute for a tight numerical check.
    B2, S2, D2, H2 = 1, 16, 256, 2
    k_param2, k_q2, k_kv2 = jax.random.split(jax.random.PRNGKey(1), 3)
    mha2 = MultiHeadAttentionPallas(D2, H2, k_param2, compute_dtype=jnp.float32)
    xq = jax.random.normal(k_q2, (B2, S2, D2), jnp.float32)
    xkv = jax.random.normal(k_kv2, (B2, S2, D2), jnp.float32)
    out2 = jax.block_until_ready(mha2(xq, xkv, xkv))
    ref2 = reference_mha(mha2, xq, xkv, xkv)
    assert jnp.allclose(out2, ref2, atol=1e-4, rtol=1e-4), "f32 cross-attn mismatch"

    print("KERNEL_OK")
</pallas_src>

<mosaic_0001>
module attributes {stable_mosaic.version = 11 : i64} {
  func.func @linear_kernel_single(%arg0: i32, %arg1: i32, %arg2: memref<16x32xbf16, #tpu.memory_space<vmem>>, %arg3: memref<32x96xbf16, #tpu.memory_space<vmem>>, %arg4: memref<1x96xf32, #tpu.memory_space<vmem>>, %arg5: memref<16x96xbf16, #tpu.memory_space<vmem>>) attributes {dimension_semantics = [#tpu.dimension_semantics<parallel>, #tpu.dimension_semantics<parallel>], iteration_bounds = array<i64: 1, 1>, scalar_prefetch = 0 : i64, scratch_operands = 0 : i64, tpu.core_type = #tpu.core_type<tc>, window_params = [{transform_indices = @transform_0, window_bounds = array<i64: 16, 32>}, {transform_indices = @transform_1, window_bounds = array<i64: 32, 96>}, {transform_indices = @transform_2, window_bounds = array<i64: 1, 96>}, {transform_indices = @transform_3, window_bounds = array<i64: 16, 96>}]} {
    %c0 = arith.constant 0 : index
    %c0_0 = arith.constant 0 : index
    %0 = vector.load %arg2[%c0, %c0_0] : memref<16x32xbf16, #tpu.memory_space<vmem>>, vector<16x32xbf16>
    %c0_1 = arith.constant 0 : index
    %c0_2 = arith.constant 0 : index
    %1 = vector.load %arg3[%c0_1, %c0_2] : memref<32x96xbf16, #tpu.memory_space<vmem>>, vector<32x96xbf16>
    %cst = arith.constant dense<0.000000e+00> : vector<16x96xf32>
    %2 = tpu.matmul %0, %1, %cst {dimension_numbers = #tpu.dot_dimension_numbers<[1], [0], [0], [1], [0, 0, 1, 1], [], []>} : vector<16x32xbf16>, vector<32x96xbf16>, vector<16x96xf32> -> vector<16x96xf32>
    %c0_3 = arith.constant 0 : index
    %c0_4 = arith.constant 0 : index
    %3 = vector.load %arg4[%c0_3, %c0_4] : memref<1x96xf32, #tpu.memory_space<vmem>>, vector<1x96xf32>
    %4 = vector.broadcast %3 : vector<1x96xf32> to vector<16x96xf32>
    %5 = arith.addf %2, %4 : vector<16x96xf32>
    %6 = arith.truncf %5 : vector<16x96xf32> to vector<16x96xbf16>
    %c0_5 = arith.constant 0 : index
    %c0_6 = arith.constant 0 : index
    %7 = vector.load %arg5[%c0_5, %c0_6] : memref<16x96xbf16, #tpu.memory_space<vmem>>, vector<16x96xbf16>
    tpu.vector_store %arg5[%c0_5, %c0_6], %6 {strides = array<i32>} : memref<16x96xbf16, #tpu.memory_space<vmem>>, vector<16x96xbf16>,
    return
  }
  func.func @transform_0(%arg0: i32, %arg1: i32) -> (i32, i32) {
    %c0_i32 = arith.constant 0 : i32
    %c0_i32_0 = arith.constant 0 : i32
    return %arg0, %c0_i32 : i32, i32
  }
  func.func @transform_1(%arg0: i32, %arg1: i32) -> (i32, i32) {
    %c0_i32 = arith.constant 0 : i32
    %c0_i32_0 = arith.constant 0 : i32
    return %c0_i32, %arg1 : i32, i32
  }
  func.func @transform_2(%arg0: i32, %arg1: i32) -> (i32, i32) {
    %c0_i32 = arith.constant 0 : i32
    %c0_i32_0 = arith.constant 0 : i32
    return %c0_i32, %arg1 : i32, i32
  }
  func.func @transform_3(%arg0: i32, %arg1: i32) -> (i32, i32) {
    %c0_i32 = arith.constant 0 : i32
    return %arg0, %arg1 : i32, i32
  }
}

</mosaic_0001>

<llo_original>
// kernel: tpu_custom_call.1
$region0: #{tpu_custom_call.1}
  #allocation0 [shape = 'u32[]', space=smem, size = 0x4, offset = 0x4, fixed_abs, tag = 'smem constant byte address 0x4 - core index']
  #allocation1 [shape = 'u32[144,128]{1,0:T(1,128)}', space=vmem, size = 0x12000, scoped, tag = 'internal scratch']
  %s0 = inlined_call_operand.hbm [shape: bf16[16,32], index: 0, kind: input, shape index: {}]
  %s1 = inlined_call_operand.hbm [shape: bf16[32,96], index: 1, kind: input, shape index: {}]
  %s2 = inlined_call_operand.vmem [shape: f32[1,96], index: 2, kind: input, shape index: {}]
  %s3 = inlined_call_operand.hbm [shape: bf16[16,96], index: 3, kind: output, shape index: {}]
  %s4 = sld [smem:[#allocation0]]
  $region30: #{tpu_custom_call.1} parent=0
    _
  %s6 = ssub.s32 1, %s4
  %s7 = scalar_select 0, %s6, %s4
  $region1: #{tpu_custom_call.1} parent=0
    #allocation2 [shape = 'u8[4096]{0}', space=vmem, size = 0x1000, scoped, tag = 'input window, operand 0, single buffered']
    #allocation3 [shape = 's32[1]{0}', space=sflag, size = 0x4, scoped, tag = 'scoped memory for tpu_custom_call.1']
    #allocation4 [shape = 's32[1]{0}', space=sflag, size = 0x4, scoped, tag = 'scoped memory for tpu_custom_call.1']
    #allocation5 [shape = 'u8[8192]{0}', space=vmem, size = 0x2000, scoped, tag = 'input window, operand 1, single buffered']
    #allocation6 [shape = 's32[1]{0}', space=sflag, size = 0x4, scoped, tag = 'scoped memory for tpu_custom_call.1']
    #allocation7 [shape = 'u8[4096]{0}', space=vmem, size = 0x1000, scoped, tag = 'output window, operand 0, single buffered']
    %8 = vsyncpa [#allocation3], 0
    %9 = vsyncpa [#allocation6], 0
    %10 = vsyncpa [#allocation4], 0
    // Predicated region
    $region2: #{tpu_custom_call.1} parent=1 // pred_check
      _
    $region3: #{tpu_custom_call.1} parent=1 // pred_check_branch
      %12 = sbr.rel (0) target = $region5
    $region4: #{tpu_custom_call.1} parent=1 // pred_region
      %s14 = ssub.s32 128, 128
      %15 = vsyncadd [#allocation3], %s14
      %s16 = sshll.u32 [#allocation2], 4
      %s17 = int_to_ptr.vmem [resolvable:$true] %s16
      %22 = dma.hbm_to_vmem [thread:$0]  %s0, 128, %s17, [#allocation3], 64, 64, 4
    $region5: #{tpu_custom_call.1} parent=1 // pred_fallthru
      _
    // Predicated region
    $region6: #{tpu_custom_call.1} parent=1 // pred_check
      _
    $region7: #{tpu_custom_call.1} parent=1 // pred_check_branch
      %24 = sbr.rel (0) target = $region9
    $region8: #{tpu_custom_call.1} parent=1 // pred_region
      %s26 = ssub.s32 256, 256
      %27 = vsyncadd [#allocation6], %s26
      %s28 = sshll.u32 [#allocation5], 4
      %s29 = int_to_ptr.vmem [resolvable:$true] %s28
      %34 = dma.hbm_to_vmem [thread:$0]  %s1, 256, %s29, [#allocation6], 64, 64, 4
    $region9: #{tpu_custom_call.1} parent=1 // pred_fallthru
      _
    // Predicated region
    $region10: #{tpu_custom_call.1} parent=1 // pred_check
      _
    $region11: #{tpu_custom_call.1} parent=1 // pred_check_branch
      %36 = sbr.rel (0) target = $region13
    $region12: #{tpu_custom_call.1} parent=1 // pred_region
      _
    $region13: #{tpu_custom_call.1} parent=1 // pred_fallthru
      _
    // Predicated region
    $region14: #{tpu_custom_call.1} parent=1 // pred_check
      _
    $region15: #{tpu_custom_call.1} parent=1 // pred_check_branch
      %38 = sbr.rel (0) target = $region17
    $region16: #{tpu_custom_call.1} parent=1 // pred_region
      %39 = dma.done [#allocation3], 128
    $region17: #{tpu_custom_call.1} parent=1 // pred_fallthru
      _
    // Predicated region
    $region18: #{tpu_custom_call.1} parent=1 // pred_check
      _
    $region19: #{tpu_custom_call.1} parent=1 // pred_check_branch
      %41 = sbr.rel (0) target = $region21
    $region20: #{tpu_custom_call.1} parent=1 // pred_region
      %42 = dma.done [#allocation6], 256
    $region21: #{tpu_custom_call.1} parent=1 // pred_fallthru
      _
    %v44 = vld [vmem:[#allocation2] sm:$0xf]
    %v45 = vld [vmem:[#allocation2 + $0x4] sm:$0xf]
    %v46 = vld [vmem:[#allocation5] sm:$0xf]
    %v47 = vld [vmem:[#allocation5 + $0x4] sm:$0xf]
    %v48 = vld [vmem:[#allocation5 + $0x8] sm:$0xf]
    %v49 = vld [vmem:[#allocation5 + $0xc] sm:$0xf]
    %v50 = vld [vmem:[%s2] sm:$0x1]
    %v52 = vlaneseq
    %v53 = vshrl.u32 %v52, 7
    %v54 = vsub.s32 0, %v53
    %v55 = vrot.slane %v50, %v54
    %v59 = vunpack.c.l.b16 %v44
    %v60 = vunpack.c.l.b16 %v45
    %v61 = vpack.c.b16 %v60, %v59
    %v66 = vunpack.c.l.b16 %v46
    %v67 = vunpack.c.l.b16 %v47
    %v68 = vunpack.c.l.b16 %v48
    %v69 = vunpack.c.l.b16 %v49
    %v70 = vpack.c.b16 %v67, %v66
    %v71 = vpack.c.b16 %v69, %v68
    %vm74 = vcmask 261120
    %v76 = vsel %vm74, %v61, 0
    %78 = vmatprep.subr.bf16.mxu0 0
    %79 = vmatpush1.bf16.msra.mxu0 %v70
    %80 = vmatprep.subr.bf16.mxu0 0
    %81 = vmatpush1.bf16.msra.mxu0 %v71
    %82 = vmatprep.subr.bf16.mxu0 0
    %83 = vmatpush1.bf16.msra.mxu0 0
    %84 = vmatprep.subr.bf16.mxu0 0
    %85 = vmatpush1.bf16.msra.mxu0 0
    %86 = vmatprep.subr.bf16.mxu0 0
    %87 = vmatpush1.bf16.msra.mxu0 0
    %88 = vmatprep.subr.bf16.mxu0 0
    %89 = vmatpush1.bf16.msra.mxu0 0
    %90 = vmatprep.subr.bf16.mxu0 0
    %91 = vmatpush1.bf16.msra.mxu0 0
    %92 = vmatprep.subr.bf16.mxu0 0
    %93 = vmatpush1.bf16.msra.mxu0 0
    %94 = vmatprep.subr.bf16.mxu0 0
    %95 = vmatpush1.bf16.msra.mxu0 0
    %96 = vmatprep.subr.bf16.mxu0 0
    %97 = vmatpush1.bf16.msra.mxu0 0
    %98 = vmatprep.subr.bf16.mxu0 0
    %99 = vmatpush1.bf16.msra.mxu0 0
    %100 = vmatprep.subr.bf16.mxu0 0
    %101 = vmatpush1.bf16.msra.mxu0 0
    %102 = vmatprep.subr.bf16.mxu0 0
    %103 = vmatpush1.bf16.msra.mxu0 0
    %104 = vmatprep.subr.bf16.mxu0 0
    %105 = vmatpush1.bf16.msra.mxu0 0
    %106 = vmatprep.subr.bf16.mxu0 0
    %107 = vmatpush1.bf16.msra.mxu0 0
    %108 = vmatprep.subr.bf16.mxu0 0
    %109 = vmatpush1.bf16.msra.mxu0 0
    %110 = vmatprep.mubr.bf16.mxu0 0
    %111 = vmatmul.mubr.bf16.gmra.mrb[0].mxu0 %v76
    %v112 = vpop.f32.mrb[0].mxu0
    %v113 = vadd.f32 %v55, %v112
    %v114 = vpop.f32.mrb[0].mxu0
    %v115 = vpop.f32.mrb[0].mxu0
    %v116 = vadd.f32 %v55, %v115
    %v117 = vpop.f32.mrb[0].mxu0
    %118 = vdwg.mxu0
    %v119 = vpack.c.bf16 %v116, %v113
    %v121 = vunpack.c.l.b16 %v119
    %v122 = vunpack.c.h.b16 %v119
    %v123 = vpack.c.b16 %v121, %v121
    %v124 = vpack.c.b16 %v122, %v122
    %vm127 = vcmask 781312
    %128 = vst.msk [vmem:[#allocation7] sm:$0xf] %vm127, %v123
    %129 = vst.msk [vmem:[#allocation7 + $0x4] sm:$0xf] %vm127, %v124
    // Predicated region
    $region22: #{tpu_custom_call.1} parent=1 // pred_check
      _
    $region23: #{tpu_custom_call.1} parent=1 // pred_check_branch
      %131 = sbr.rel (0) target = $region25
    $region24: #{tpu_custom_call.1} parent=1 // pred_region
      %s133 = ssub.s32 128, 128
      %134 = vsyncadd [#allocation4], %s133
      %s135 = sshll.u32 [#allocation7], 4
      %s136 = int_to_ptr.vmem [resolvable:$true] %s135
      %141 = dma.vmem_to_hbm [thread:$0]  %s136, 128, %s3, [#allocation4], 64, 64, 4
    $region25: #{tpu_custom_call.1} parent=1 // pred_fallthru
      _
    // Predicated region
    $region26: #{tpu_custom_call.1} parent=1 // pred_check
      _
    $region27: #{tpu_custom_call.1} parent=1 // pred_check_branch
      %143 = sbr.rel (0) target = $region29
    $region28: #{tpu_custom_call.1} parent=1 // pred_region
      %144 = dma.done [#allocation4], 128
    $region29: #{tpu_custom_call.1} parent=1 // pred_fallthru
      _
    %145 = vsyncpa [#allocation3], 1
    %146 = vsyncpa [#allocation6], 1
    %147 = vsyncpa [#allocation4], 1

</llo_original>
